<compile_context>
chip_gen: v7x
topology: tpu7x:2x2x1
jax: 0.10.0
libtpu: 0.0.40
codegen_flags: <defaults>
</compile_context>

<pallas_src>
import math

import jax
import jax.numpy as jnp
import numpy as np
from jax.experimental import pallas as pl
from jax.experimental.pallas import tpu as pltpu

H = 8               # number of heads (fixed in the module)
ATT_DIM = 128       # self.attention_dim
D_K = ATT_DIM // H  # 16


def _attention_kernel(onehot_ref, xnf_ref, xfn_ref, wqt_ref, wkt_ref, wv_ref,
                      bq_ref, bk_ref, bv_ref, gt_ref, attn_ref, v_ref):
    bt = xnf_ref.shape[0]
    e = onehot_ref.shape[1] // 2

    # Batch-invariant operands: load once, reuse across the Bt batch rows.
    onehot = onehot_ref[...]          # (N, 2E): [src one-hots | dst one-hots]
    wv = wv_ref[...]                  # (F_in, 128)
    bv = bv_ref[...]                  # (1, 128)
    wq_t = wqt_ref[...]               # (128, F_in)
    wk_t = wkt_ref[...]               # (128, F_in)
    bq = bq_ref[...]                  # (128, 1)
    bk = bk_ref[...]                  # (128, 1)
    gt = gt_ref[...]                  # (H, 128), 1/sqrt(d_k) folded in

    for b in range(bt):               # Bt is a small static constant
        # V projection: (N, F_in) @ (F_in, 128) -> lane-dense (N, 128) store.
        v_ref[b] = jnp.dot(xnf_ref[b], wv,
                           preferred_element_type=jnp.float32) + bv

        # Gather-before-project: x_b^T (F_in, N) @ onehot (N, 2E) -> (F_in, 2E).
        gath = jnp.dot(xfn_ref[b], onehot, preferred_element_type=jnp.float32)

        # Tiny-K edge projections (kept as two matmuls: they act on different
        # halves of `gath`, and K=F_in work is negligible at these shapes).
        q_t = jnp.dot(wq_t, gath[:, :e],
                      preferred_element_type=jnp.float32) + bq   # (128, E)
        k_t = jnp.dot(wk_t, gath[:, e:],
                      preferred_element_type=jnp.float32) + bk   # (128, E)

        # Per-head dot products via group-sum matmul (scale pre-folded):
        # (H, 128) @ (128, E) -> (H, E), E lane-dense.
        prods = jnp.dot(gt, q_t * k_t, preferred_element_type=jnp.float32)

        # Softmax over the edge (lane) axis; exact reciprocal on the EUP.
        m = jnp.max(prods, axis=-1, keepdims=True)
        p = jnp.exp(prods - m)
        inv = pl.reciprocal(jnp.sum(p, axis=-1, keepdims=True))
        attn_ref[b] = p * inv


def sp_graph_trans_attention(x, edge, wq, wk, wv, bq, bk, bv):
    """x: (B, N, F_in) f32; edge: (2, E) int.  wq/wk/wv: (F_in, 128) = W^T;
    bq/bk/bv: (1, 128).  Returns (attention (B, E, H), v (B, N, D_K, H)) --
    identical semantics to the PyTorch module's forward."""
    B, N, F_in = x.shape
    E = int(edge.shape[1])

    # Batch-invariant one-hot gather matrix (src | dst), built once in XLA.
    # TODO(synk): out-of-range edge indices give an all-zero one-hot column
    # (gathered value 0) instead of raising like PyTorch advanced indexing.
    rows = jnp.arange(N, dtype=jnp.int32)[:, None]
    src = edge[0].astype(jnp.int32)[None, :]
    dst = edge[1].astype(jnp.int32)[None, :]
    onehot = jnp.concatenate([rows == src, rows == dst],
                             axis=1).astype(jnp.float32)          # (N, 2E)

    # Transposed head group-sum matrix with 1/sqrt(d_k) folded in: (H, 128).
    gt = (np.arange(H)[:, None] == np.arange(ATT_DIM)[None, :] // D_K)
    gt = jnp.asarray(gt.astype(np.float32) / math.sqrt(D_K))

    wqt = wq.T                          # (128, F_in)
    wkt = wk.T                          # (128, F_in)
    bq_col = bq.reshape(ATT_DIM, 1)
    bk_col = bk.reshape(ATT_DIM, 1)
    bv_row = bv.reshape(1, ATT_DIM)

    # Batch blocking: exactly min(B, 2) grid steps.  Keeps both v7x TCs fed
    # (dimension_semantics="parallel") while amortizing per-step overhead.
    n_blocks = min(B, 2)
    bt = -(-B // n_blocks)              # ceil(B / n_blocks)
    b_pad = n_blocks * bt
    if b_pad != B:
        x = jnp.pad(x, ((0, b_pad - B), (0, 0), (0, 0)))
    x_fn = x.transpose(0, 2, 1)         # (B_pad, F_in, N), layout glue for gather

    attn_t, v_flat = pl.pallas_call(
        _attention_kernel,
        out_shape=(jax.ShapeDtypeStruct((b_pad, H, E), jnp.float32),
                   jax.ShapeDtypeStruct((b_pad, N, ATT_DIM), jnp.float32)),
        grid=(n_blocks,),
        in_specs=[
            pl.BlockSpec((N, 2 * E), lambda i: (0, 0)),           # one-hot (const)
            pl.BlockSpec((bt, N, F_in), lambda i: (i, 0, 0)),     # x
            pl.BlockSpec((bt, F_in, N), lambda i: (i, 0, 0)),     # x^T
            pl.BlockSpec((ATT_DIM, F_in), lambda i: (0, 0)),      # Wq (out, in)
            pl.BlockSpec((ATT_DIM, F_in), lambda i: (0, 0)),      # Wk (out, in)
            pl.BlockSpec((F_in, ATT_DIM), lambda i: (0, 0)),      # Wv^T
            pl.BlockSpec((ATT_DIM, 1), lambda i: (0, 0)),         # bq (column)
            pl.BlockSpec((ATT_DIM, 1), lambda i: (0, 0)),         # bk (column)
            pl.BlockSpec((1, ATT_DIM), lambda i: (0, 0)),         # bv (row)
            pl.BlockSpec((H, ATT_DIM), lambda i: (0, 0)),         # scaled group-sum
        ],
        out_specs=(
            pl.BlockSpec((bt, H, E), lambda i: (i, 0, 0)),        # attn^T
            pl.BlockSpec((bt, N, ATT_DIM), lambda i: (i, 0, 0)),  # v (flat)
        ),
        compiler_params=pltpu.CompilerParams(
            dimension_semantics=("parallel",)),
    )(onehot, x, x_fn, wqt, wkt, wv, bq_col, bk_col, bv_row, gt)

    # Layout glue (XLA): (B,H,E)->(B,E,H); (B,N,128)->(B,N,H,D_K)->(B,N,D_K,H).
    attn = attn_t[:B].transpose(0, 2, 1)
    v = v_flat[:B].reshape(B, N, H, D_K).transpose(0, 1, 3, 2)
    return attn, v


def _reference(x, edge, wq, wk, wv, bq, bk, bv):
    """Pure-JAX reference mirroring the PyTorch forward."""
    B, N, _ = x.shape
    q = x @ wq + bq
    k = x @ wk + bk
    v = x @ wv + bv
    qh = q.reshape(B, N, H, D_K)
    kh = k.reshape(B, N, H, D_K)
    vh = v.reshape(B, N, H, D_K).transpose(0, 1, 3, 2)
    src = qh[:, edge[0], :, :]                       # (B, E, H, D_K)
    dst = kh[:, edge[1], :, :]
    prods = (src * dst).sum(-1) / np.sqrt(D_K)       # (B, E, H)
    attn = jax.nn.softmax(prods, axis=1)
    return attn, vh


if __name__ == "__main__":
    key = jax.random.PRNGKey(0)
    kx, ke, kbq, kbk, kbv = jax.random.split(key, 5)

    B, N, F_IN, E = 2, 16, 4, 32   # small shapes (module global uses (10,307,1,4))

    # PyTorch input (B, N, 1, F_in) -> squeeze size-1 dim (glue).
    x4 = jax.random.normal(kx, (B, N, 1, F_IN), dtype=jnp.float32)
    x = x4.reshape(B, N, F_IN)
    edge = jax.random.randint(ke, (2, E), 0, N, dtype=jnp.int32)

    # Deterministic params: init_weights sets Linear weights to 1e-5;
    # biases follow nn.Linear's default uniform(-1/sqrt(fan_in), 1/sqrt(fan_in)).
    bound = 1.0 / math.sqrt(F_IN)
    wq = jnp.full((F_IN, ATT_DIM), 1e-5, dtype=jnp.float32)   # W^T
    wk = jnp.full((F_IN, ATT_DIM), 1e-5, dtype=jnp.float32)
    wv = jnp.full((F_IN, ATT_DIM), 1e-5, dtype=jnp.float32)
    bq = jax.random.uniform(kbq, (1, ATT_DIM), jnp.float32, -bound, bound)
    bk = jax.random.uniform(kbk, (1, ATT_DIM), jnp.float32, -bound, bound)
    bv = jax.random.uniform(kbv, (1, ATT_DIM), jnp.float32, -bound, bound)
    # TODO(synk): self.Wout / self.activation (Sigmoid) are unused in forward(); not implemented.

    attn, v = sp_graph_trans_attention(x, edge, wq, wk, wv, bq, bk, bv)
    jax.block_until_ready((attn, v))

    attn_ref, v_ref = _reference(x, edge, wq, wk, wv, bq, bk, bv)
    np.testing.assert_allclose(np.asarray(attn), np.asarray(attn_ref),
                               rtol=1e-5, atol=1e-6)
    np.testing.assert_allclose(np.asarray(v), np.asarray(v_ref),
                               rtol=1e-5, atol=1e-6)
    assert attn.shape == (B, E, H) and v.shape == (B, N, D_K, H)
    print("KERNEL_OK")
</pallas_src>

<mosaic_0001>
module attributes {stable_mosaic.version = 11 : i64} {
  func.func @_attention_kernel(%arg0: i32, %arg1: memref<16x64xf32, #tpu.memory_space<vmem>>, %arg2: memref<1x16x4xf32, #tpu.memory_space<vmem>>, %arg3: memref<1x4x16xf32, #tpu.memory_space<vmem>>, %arg4: memref<128x4xf32, #tpu.memory_space<vmem>>, %arg5: memref<128x4xf32, #tpu.memory_space<vmem>>, %arg6: memref<4x128xf32, #tpu.memory_space<vmem>>, %arg7: memref<128x1xf32, #tpu.memory_space<vmem>>, %arg8: memref<128x1xf32, #tpu.memory_space<vmem>>, %arg9: memref<1x128xf32, #tpu.memory_space<vmem>>, %arg10: memref<8x128xf32, #tpu.memory_space<vmem>>, %arg11: memref<1x8x32xf32, #tpu.memory_space<vmem>>, %arg12: memref<1x16x128xf32, #tpu.memory_space<vmem>>) attributes {dimension_semantics = [#tpu.dimension_semantics<parallel>], iteration_bounds = array<i64: 2>, scalar_prefetch = 0 : i64, scratch_operands = 0 : i64, tpu.core_type = #tpu.core_type<tc>, window_params = [{pipeline_mode = #tpu.pipeline_mode<synchronous>, transform_indices = @transform_0, window_bounds = array<i64: 16, 64>}, {transform_indices = @transform_1, window_bounds = array<i64: 1, 16, 4>}, {transform_indices = @transform_2, window_bounds = array<i64: 1, 4, 16>}, {pipeline_mode = #tpu.pipeline_mode<synchronous>, transform_indices = @transform_3, window_bounds = array<i64: 128, 4>}, {pipeline_mode = #tpu.pipeline_mode<synchronous>, transform_indices = @transform_4, window_bounds = array<i64: 128, 4>}, {pipeline_mode = #tpu.pipeline_mode<synchronous>, transform_indices = @transform_5, window_bounds = array<i64: 4, 128>}, {pipeline_mode = #tpu.pipeline_mode<synchronous>, transform_indices = @transform_6, window_bounds = array<i64: 128, 1>}, {pipeline_mode = #tpu.pipeline_mode<synchronous>, transform_indices = @transform_7, window_bounds = array<i64: 128, 1>}, {pipeline_mode = #tpu.pipeline_mode<synchronous>, transform_indices = @transform_8, window_bounds = array<i64: 1, 128>}, {pipeline_mode = #tpu.pipeline_mode<synchronous>, transform_indices = @transform_9, window_bounds = array<i64: 8, 128>}, {transform_indices = @transform_10, window_bounds = array<i64: 1, 8, 32>}, {transform_indices = @transform_11, window_bounds = array<i64: 1, 16, 128>}]} {
    %c0 = arith.constant 0 : index
    %c0_0 = arith.constant 0 : index
    %0 = vector.load %arg1[%c0, %c0_0] : memref<16x64xf32, #tpu.memory_space<vmem>>, vector<16x64xf32>
    %c0_1 = arith.constant 0 : index
    %c0_2 = arith.constant 0 : index
    %1 = vector.load %arg6[%c0_1, %c0_2] : memref<4x128xf32, #tpu.memory_space<vmem>>, vector<4x128xf32>
    %c0_3 = arith.constant 0 : index
    %c0_4 = arith.constant 0 : index
    %2 = vector.load %arg9[%c0_3, %c0_4] : memref<1x128xf32, #tpu.memory_space<vmem>>, vector<1x128xf32>
    %c0_5 = arith.constant 0 : index
    %c0_6 = arith.constant 0 : index
    %3 = vector.load %arg4[%c0_5, %c0_6] : memref<128x4xf32, #tpu.memory_space<vmem>>, vector<128x4xf32>
    %c0_7 = arith.constant 0 : index
    %c0_8 = arith.constant 0 : index
    %4 = vector.load %arg5[%c0_7, %c0_8] : memref<128x4xf32, #tpu.memory_space<vmem>>, vector<128x4xf32>
    %c0_9 = arith.constant 0 : index
    %c0_10 = arith.constant 0 : index
    %5 = vector.load %arg7[%c0_9, %c0_10] : memref<128x1xf32, #tpu.memory_space<vmem>>, vector<128x1xf32>
    %c0_11 = arith.constant 0 : index
    %c0_12 = arith.constant 0 : index
    %6 = vector.load %arg8[%c0_11, %c0_12] : memref<128x1xf32, #tpu.memory_space<vmem>>, vector<128x1xf32>
    %c0_13 = arith.constant 0 : index
    %c0_14 = arith.constant 0 : index
    %7 = vector.load %arg10[%c0_13, %c0_14] : memref<8x128xf32, #tpu.memory_space<vmem>>, vector<8x128xf32>
    %c0_15 = arith.constant 0 : index
    %c0_16 = arith.constant 0 : index
    %c0_17 = arith.constant 0 : index
    %8 = vector.load %arg2[%c0_15, %c0_16, %c0_17] : memref<1x16x4xf32, #tpu.memory_space<vmem>>, vector<1x16x4xf32>
    %9 = vector.shape_cast %8 : vector<1x16x4xf32> to vector<16x4xf32>
    %cst = arith.constant dense<0.000000e+00> : vector<16x128xf32>
    %10 = tpu.matmul %9, %1, %cst {dimension_numbers = #tpu.dot_dimension_numbers<[1], [0], [0], [1], [0, 0, 1, 1], [], []>} : vector<16x4xf32>, vector<4x128xf32>, vector<16x128xf32> -> vector<16x128xf32>
    %11 = vector.broadcast %2 : vector<1x128xf32> to vector<16x128xf32>
    %12 = arith.addf %10, %11 : vector<16x128xf32>
    %c0_18 = arith.constant 0 : index
    %c0_19 = arith.constant 0 : index
    %c0_20 = arith.constant 0 : index
    %13 = vector.load %arg12[%c0_18, %c0_19, %c0_20] : memref<1x16x128xf32, #tpu.memory_space<vmem>>, vector<1x16x128xf32>
    %14 = vector.shape_cast %13 : vector<1x16x128xf32> to vector<16x128xf32>
    %15 = vector.shape_cast %12 : vector<16x128xf32> to vector<1x16x128xf32>
    tpu.vector_store %arg12[%c0_18, %c0_19, %c0_20], %15 {strides = array<i32>} : memref<1x16x128xf32, #tpu.memory_space<vmem>>, vector<1x16x128xf32>,
    %c0_21 = arith.constant 0 : index
    %c0_22 = arith.constant 0 : index
    %c0_23 = arith.constant 0 : index
    %16 = vector.load %arg3[%c0_21, %c0_22, %c0_23] : memref<1x4x16xf32, #tpu.memory_space<vmem>>, vector<1x4x16xf32>
    %17 = vector.shape_cast %16 : vector<1x4x16xf32> to vector<4x16xf32>
    %cst_24 = arith.constant dense<0.000000e+00> : vector<4x64xf32>
    %18 = tpu.matmul %17, %0, %cst_24 {dimension_numbers = #tpu.dot_dimension_numbers<[1], [0], [0], [1], [0, 0, 1, 1], [], []>} : vector<4x16xf32>, vector<16x64xf32>, vector<4x64xf32> -> vector<4x64xf32>
    %19 = vector.extract_strided_slice %18 {offsets = [0, 0], sizes = [4, 32], strides = [1, 1]} : vector<4x64xf32> to vector<4x32xf32>
    %cst_25 = arith.constant dense<0.000000e+00> : vector<128x32xf32>
    %20 = tpu.matmul %3, %19, %cst_25 {dimension_numbers = #tpu.dot_dimension_numbers<[1], [0], [0], [1], [0, 0, 1, 1], [], []>} : vector<128x4xf32>, vector<4x32xf32>, vector<128x32xf32> -> vector<128x32xf32>
    %21 = vector.broadcast %5 : vector<128x1xf32> to vector<128x32xf32>
    %22 = arith.addf %20, %21 : vector<128x32xf32>
    %23 = vector.extract_strided_slice %18 {offsets = [0, 32], sizes = [4, 32], strides = [1, 1]} : vector<4x64xf32> to vector<4x32xf32>
    %cst_26 = arith.constant dense<0.000000e+00> : vector<128x32xf32>
    %24 = tpu.matmul %4, %23, %cst_26 {dimension_numbers = #tpu.dot_dimension_numbers<[1], [0], [0], [1], [0, 0, 1, 1], [], []>} : vector<128x4xf32>, vector<4x32xf32>, vector<128x32xf32> -> vector<128x32xf32>
    %25 = vector.broadcast %6 : vector<128x1xf32> to vector<128x32xf32>
    %26 = arith.addf %24, %25 : vector<128x32xf32>
    %27 = arith.mulf %22, %26 : vector<128x32xf32>
    %cst_27 = arith.constant dense<0.000000e+00> : vector<8x32xf32>
    %28 = tpu.matmul %7, %27, %cst_27 {dimension_numbers = #tpu.dot_dimension_numbers<[1], [0], [0], [1], [0, 0, 1, 1], [], []>} : vector<8x128xf32>, vector<128x32xf32>, vector<8x32xf32> -> vector<8x32xf32>
    %cst_28 = arith.constant dense<0xFF800000> : vector<8xf32>
    %29 = vector.multi_reduction <maximumf>, %28, %cst_28 [1] : vector<8x32xf32> to vector<8xf32>
    %30 = vector.shape_cast %29 : vector<8xf32> to vector<8x1xf32>
    %31 = vector.broadcast %30 : vector<8x1xf32> to vector<8x32xf32>
    %32 = arith.subf %28, %31 : vector<8x32xf32>
    %33 = math.exp %32 : vector<8x32xf32>
    %cst_29 = arith.constant dense<0.000000e+00> : vector<8xf32>
    %34 = vector.multi_reduction <add>, %33, %cst_29 [1] : vector<8x32xf32> to vector<8xf32>
    %35 = vector.shape_cast %34 : vector<8xf32> to vector<8x1xf32>
    %36 = tpu.reciprocal %35 : vector<8x1xf32> -> vector<8x1xf32>
    %37 = vector.broadcast %36 : vector<8x1xf32> to vector<8x32xf32>
    %38 = arith.mulf %33, %37 : vector<8x32xf32>
    %c0_30 = arith.constant 0 : index
    %c0_31 = arith.constant 0 : index
    %c0_32 = arith.constant 0 : index
    %39 = vector.load %arg11[%c0_30, %c0_31, %c0_32] : memref<1x8x32xf32, #tpu.memory_space<vmem>>, vector<1x8x32xf32>
    %40 = vector.shape_cast %39 : vector<1x8x32xf32> to vector<8x32xf32>
    %41 = vector.shape_cast %38 : vector<8x32xf32> to vector<1x8x32xf32>
    tpu.vector_store %arg11[%c0_30, %c0_31, %c0_32], %41 {strides = array<i32>} : memref<1x8x32xf32, #tpu.memory_space<vmem>>, vector<1x8x32xf32>,
    return
  }
  func.func @transform_0(%arg0: i32) -> (i32, i32) {
    %c0_i32 = arith.constant 0 : i32
    %c0_i32_0 = arith.constant 0 : i32
    %c0_i32_1 = arith.constant 0 : i32
    return %c0_i32, %c0_i32_0 : i32, i32
  }
  func.func @transform_1(%arg0: i32) -> (i32, i32, i32) {
    %c0_i32 = arith.constant 0 : i32
    %c0_i32_0 = arith.constant 0 : i32
    %c0_i32_1 = arith.constant 0 : i32
    return %arg0, %c0_i32, %c0_i32_0 : i32, i32, i32
  }
  func.func @transform_2(%arg0: i32) -> (i32, i32, i32) {
    %c0_i32 = arith.constant 0 : i32
    %c0_i32_0 = arith.constant 0 : i32
    %c0_i32_1 = arith.constant 0 : i32
    return %arg0, %c0_i32, %c0_i32_0 : i32, i32, i32
  }
  func.func @transform_3(%arg0: i32) -> (i32, i32) {
    %c0_i32 = arith.constant 0 : i32
    %c0_i32_0 = arith.constant 0 : i32
    %c0_i32_1 = arith.constant 0 : i32
    return %c0_i32, %c0_i32_0 : i32, i32
  }
  func.func @transform_4(%arg0: i32) -> (i32, i32) {
    %c0_i32 = arith.constant 0 : i32
    %c0_i32_0 = arith.constant 0 : i32
    %c0_i32_1 = arith.constant 0 : i32
    return %c0_i32, %c0_i32_0 : i32, i32
  }
  func.func @transform_5(%arg0: i32) -> (i32, i32) {
    %c0_i32 = arith.constant 0 : i32
    %c0_i32_0 = arith.constant 0 : i32
    %c0_i32_1 = arith.constant 0 : i32
    return %c0_i32, %c0_i32_0 : i32, i32
  }
  func.func @transform_6(%arg0: i32) -> (i32, i32) {
    %c0_i32 = arith.constant 0 : i32
    %c0_i32_0 = arith.constant 0 : i32
    %c0_i32_1 = arith.constant 0 : i32
    return %c0_i32, %c0_i32_0 : i32, i32
  }
  func.func @transform_7(%arg0: i32) -> (i32, i32) {
    %c0_i32 = arith.constant 0 : i32
    %c0_i32_0 = arith.constant 0 : i32
    %c0_i32_1 = arith.constant 0 : i32
    return %c0_i32, %c0_i32_0 : i32, i32
  }
  func.func @transform_8(%arg0: i32) -> (i32, i32) {
    %c0_i32 = arith.constant 0 : i32
    %c0_i32_0 = arith.constant 0 : i32
    %c0_i32_1 = arith.constant 0 : i32
    return %c0_i32, %c0_i32_0 : i32, i32
  }
  func.func @transform_9(%arg0: i32) -> (i32, i32) {
    %c0_i32 = arith.constant 0 : i32
    %c0_i32_0 = arith.constant 0 : i32
    %c0_i32_1 = arith.constant 0 : i32
    return %c0_i32, %c0_i32_0 : i32, i32
  }
  func.func @transform_10(%arg0: i32) -> (i32, i32, i32) {
    %c0_i32 = arith.constant 0 : i32
    %c0_i32_0 = arith.constant 0 : i32
    %c0_i32_1 = arith.constant 0 : i32
    return %arg0, %c0_i32, %c0_i32_0 : i32, i32, i32
  }
  func.func @transform_11(%arg0: i32) -> (i32, i32, i32) {
    %c0_i32 = arith.constant 0 : i32
    %c0_i32_0 = arith.constant 0 : i32
    %c0_i32_1 = arith.constant 0 : i32
    return %arg0, %c0_i32, %c0_i32_0 : i32, i32, i32
  }
}

</mosaic_0001>

<llo_original>
// kernel: tpu_custom_call.1
$region0: #{tpu_custom_call.1}
  #allocation0 [shape = 'u32[]', space=smem, size = 0x4, offset = 0x4, fixed_abs, tag = 'smem constant byte address 0x4 - core index']
  #allocation1 [shape = 'u32[144,128]{1,0:T(1,128)}', space=vmem, size = 0x12000, scoped, tag = 'internal scratch']
  %s0 = inlined_call_operand.vmem [shape: f32[16,64], index: 0, kind: input, shape index: {}]
  %s1 = inlined_call_operand.vmem [shape: f32[2,16,4], index: 1, kind: input, shape index: {}]
  %s2 = inlined_call_operand.vmem [shape: f32[2,4,16], index: 2, kind: input, shape index: {}]
  %s3 = inlined_call_operand.vmem [shape: f32[128,4], index: 3, kind: input, shape index: {}]
  %s4 = inlined_call_operand.vmem [shape: f32[128,4], index: 4, kind: input, shape index: {}]
  %s5 = inlined_call_operand.vmem [shape: f32[4,128], index: 5, kind: input, shape index: {}]
  %s6 = inlined_call_operand.vmem [shape: f32[128,1], index: 6, kind: input, shape index: {}]
  %s7 = inlined_call_operand.vmem [shape: f32[128,1], index: 7, kind: input, shape index: {}]
  %s8 = inlined_call_operand.vmem [shape: f32[1,128], index: 8, kind: input, shape index: {}]
  %s9 = inlined_call_operand.vmem [shape: f32[8,128], index: 9, kind: input, shape index: {}]
  %s10 = inlined_call_operand.hbm [shape: f32[2,8,32], index: 10, kind: output, shape index: {0}]
  %s11 = inlined_call_operand.hbm [shape: f32[2,16,128], index: 11, kind: output, shape index: {1}]
  %12 = xla_tuple %s10, %s11
  %s13 = sld [smem:[#allocation0]]
  $region81: #{tpu_custom_call.1} parent=0
    _
  %s15 = ssub.s32 1, %s13
  %s16 = scalar_select 0, %s15, %s13
  $region1: #{tpu_custom_call.1} parent=0
    #allocation2 [shape = 'u8[8192]{0}', space=vmem, size = 0x2000, scoped, tag = 'output window, operand 0']
    #allocation3 [shape = 's32[2]{0}', space=sflag, size = 0x8, scoped, tag = 'scoped memory for tpu_custom_call.1']
    #allocation4 [shape = 'u8[16384]{0}', space=vmem, size = 0x4000, scoped, tag = 'output window, operand 1']
    #allocation5 [shape = 's32[2]{0}', space=sflag, size = 0x8, scoped, tag = 'scoped memory for tpu_custom_call.1']
    %17 = vsyncpa [#allocation3], 0
    %s18 = scalar_lea.sflag [#allocation3], 1
    %19 = vsyncpa %s18, 0
    %20 = vsyncpa [#allocation5], 0
    %s21 = scalar_lea.sflag [#allocation5], 1
    %22 = vsyncpa %s21, 0
    loop: start=0, step=1, limit=4
    $region2: #{tpu_custom_call.1} parent=1 // loop_pre_header
      _
    $region3: #{tpu_custom_call.1} parent=1 // loop_header
      %s24 = sphi 0, %s28
      %p25 = scmp.ge.s32.totalorder %s24, 4
      %s32 = sphi 0, %s32
      %s34 = sphi 0, %s32
      %s35 = sphi 0, %s34
      %s49 = sphi 0, %s35
      %s55 = sphi 0, %s57
      %s58 = sphi 0, %s55
      %s59 = sphi 0, %s58
      %s75 = sphi 0, %s59
      %s81 = sphi 0, %s83
      %s84 = sphi 0, %s81
      %s85 = sphi 0, %s84
      %s101 = sphi 0, %s85
      %s105 = sphi 0, %s105
      %s107 = sphi 0, %s105
      %s108 = sphi 0, %s107
      %s122 = sphi 0, %s108
      %s126 = sphi 0, %s126
      %s128 = sphi 0, %s126
      %s129 = sphi 0, %s128
      %s143 = sphi 0, %s129
      %s147 = sphi 0, %s147
      %s149 = sphi 0, %s147
      %s150 = sphi 0, %s149
      %s164 = sphi 0, %s150
      %s168 = sphi 0, %s168
      %s170 = sphi 0, %s168
      %s171 = sphi 0, %s170
      %s185 = sphi 0, %s171
      %s189 = sphi 0, %s189
      %s191 = sphi 0, %s189
      %s192 = sphi 0, %s191
      %s206 = sphi 0, %s192
      %s210 = sphi 0, %s210
      %s212 = sphi 0, %s210
      %s213 = sphi 0, %s212
      %s227 = sphi 0, %s213
      %s231 = sphi 0, %s231
      %s233 = sphi 0, %s231
      %s234 = sphi 0, %s233
      %s248 = sphi 0, %s234
      %s254 = sphi 0, %s256
      %s257 = sphi 0, %s254
      %s258 = sphi 0, %s257
      %s274 = sphi 0, %s258
      %s280 = sphi 0, %s282
      %s283 = sphi 0, %s280
      %s284 = sphi 0, %s283
      %s300 = sphi 0, %s284
    $region4: #{tpu_custom_call.1} parent=1 // loop_header_branch
      %27 = sbr.rel (%p25) target = $region8
    $region5: #{tpu_custom_call.1} parent=1 // loop_body
      %s29 = ssub.s32 %s24, 1
      %s30 = ssub.s32 %s24, 2
      %s31 = sadd.s32 %s24, 1
      %s33 = sadd.s32 %s32, 1
      %p36 = scmp.eq.s32.totalorder %s24, 1
      %p37 = scmp.ne.s32.totalorder %s32, %s34
      %p38 = scmp.eq.s32.totalorder %s24, 0
      %p39 = por %p37, %p38
      %p40 = scmp.ne.s32.totalorder %s32, %s34
      %p41 = scmp.eq.s32.totalorder %s29, 1
      %p42 = por %p40, %p41
      %p43 = scmp.ne.s32.totalorder %s34, %s35
      %p44 = scmp.eq.s32.totalorder %s29, 0
      %p45 = por %p43, %p44
      %p46 = scmp.ne.s32.totalorder %s34, %s35
      %p47 = scmp.eq.s32.totalorder %s30, 1
      %p48 = por %p46, %p47
      %p50 = scmp.ne.s32.totalorder %s35, %s49
      %p51 = scmp.eq.s32.totalorder %s30, 0
      %p52 = por %p50, %p51
      %s53 = ssub.s32 %s24, %s31
      %p54 = scmp.eq.s32.totalorder %s53, 0
      %s56 = sadd.s32 %s55, 1
      %s57 = scalar_select %p54, %s55, %s56
      %p60 = pneg %p54
      %p61 = scmp.eq.s32.totalorder %s24, 1
      %p62 = por %p60, %p61
      %p63 = scmp.ne.s32.totalorder %s55, %s58
      %p64 = scmp.eq.s32.totalorder %s24, 0
      %p65 = por %p63, %p64
      %p66 = scmp.ne.s32.totalorder %s55, %s58
      %p67 = scmp.eq.s32.totalorder %s29, 1
      %p68 = por %p66, %p67
      %p69 = scmp.ne.s32.totalorder %s58, %s59
      %p70 = scmp.eq.s32.totalorder %s29, 0
      %p71 = por %p69, %p70
      %p72 = scmp.ne.s32.totalorder %s58, %s59
      %p73 = scmp.eq.s32.totalorder %s30, 1
      %p74 = por %p72, %p73
      %p76 = scmp.ne.s32.totalorder %s59, %s75
      %p77 = scmp.eq.s32.totalorder %s30, 0
      %p78 = por %p76, %p77
      %s79 = ssub.s32 %s24, %s31
      %p80 = scmp.eq.s32.totalorder %s79, 0
      %s82 = sadd.s32 %s81, 1
      %s83 = scalar_select %p80, %s81, %s82
      %p86 = pneg %p80
      %p87 = scmp.eq.s32.totalorder %s24, 1
      %p88 = por %p86, %p87
      %p89 = scmp.ne.s32.totalorder %s81, %s84
      %p90 = scmp.eq.s32.totalorder %s24, 0
      %p91 = por %p89, %p90
      %p92 = scmp.ne.s32.totalorder %s81, %s84
      %p93 = scmp.eq.s32.totalorder %s29, 1
      %p94 = por %p92, %p93
      %p95 = scmp.ne.s32.totalorder %s84, %s85
      %p96 = scmp.eq.s32.totalorder %s29, 0
      %p97 = por %p95, %p96
      %p98 = scmp.ne.s32.totalorder %s84, %s85
      %p99 = scmp.eq.s32.totalorder %s30, 1
      %p100 = por %p98, %p99
      %p102 = scmp.ne.s32.totalorder %s85, %s101
      %p103 = scmp.eq.s32.totalorder %s30, 0
      %p104 = por %p102, %p103
      %s106 = sadd.s32 %s105, 1
      %p109 = scmp.eq.s32.totalorder %s24, 1
      %p110 = scmp.ne.s32.totalorder %s105, %s107
      %p111 = scmp.eq.s32.totalorder %s24, 0
      %p112 = por %p110, %p111
      %p113 = scmp.ne.s32.totalorder %s105, %s107
      %p114 = scmp.eq.s32.totalorder %s29, 1
      %p115 = por %p113, %p114
      %p116 = scmp.ne.s32.totalorder %s107, %s108
      %p117 = scmp.eq.s32.totalorder %s29, 0
      %p118 = por %p116, %p117
      %p119 = scmp.ne.s32.totalorder %s107, %s108
      %p120 = scmp.eq.s32.totalorder %s30, 1
      %p121 = por %p119, %p120
      %p123 = scmp.ne.s32.totalorder %s108, %s122
      %p124 = scmp.eq.s32.totalorder %s30, 0
      %p125 = por %p123, %p124
      %s127 = sadd.s32 %s126, 1
      %p130 = scmp.eq.s32.totalorder %s24, 1
      %p131 = scmp.ne.s32.totalorder %s126, %s128
      %p132 = scmp.eq.s32.totalorder %s24, 0
      %p133 = por %p131, %p132
      %p134 = scmp.ne.s32.totalorder %s126, %s128
      %p135 = scmp.eq.s32.totalorder %s29, 1
      %p136 = por %p134, %p135
      %p137 = scmp.ne.s32.totalorder %s128, %s129
      %p138 = scmp.eq.s32.totalorder %s29, 0
      %p139 = por %p137, %p138
      %p140 = scmp.ne.s32.totalorder %s128, %s129
      %p141 = scmp.eq.s32.totalorder %s30, 1
      %p142 = por %p140, %p141
      %p144 = scmp.ne.s32.totalorder %s129, %s143
      %p145 = scmp.eq.s32.totalorder %s30, 0
      %p146 = por %p144, %p145
      %s148 = sadd.s32 %s147, 1
      %p151 = scmp.eq.s32.totalorder %s24, 1
      %p152 = scmp.ne.s32.totalorder %s147, %s149
      %p153 = scmp.eq.s32.totalorder %s24, 0
      %p154 = por %p152, %p153
      %p155 = scmp.ne.s32.totalorder %s147, %s149
      %p156 = scmp.eq.s32.totalorder %s29, 1
      %p157 = por %p155, %p156
      %p158 = scmp.ne.s32.totalorder %s149, %s150
      %p159 = scmp.eq.s32.totalorder %s29, 0
      %p160 = por %p158, %p159
      %p161 = scmp.ne.s32.totalorder %s149, %s150
      %p162 = scmp.eq.s32.totalorder %s30, 1
      %p163 = por %p161, %p162
      %p165 = scmp.ne.s32.totalorder %s150, %s164
      %p166 = scmp.eq.s32.totalorder %s30, 0
      %p167 = por %p165, %p166
      %s169 = sadd.s32 %s168, 1
      %p172 = scmp.eq.s32.totalorder %s24, 1
      %p173 = scmp.ne.s32.totalorder %s168, %s170
      %p174 = scmp.eq.s32.totalorder %s24, 0
      %p175 = por %p173, %p174
      %p176 = scmp.ne.s32.totalorder %s168, %s170
      %p177 = scmp.eq.s32.totalorder %s29, 1
      %p178 = por %p176, %p177
      %p179 = scmp.ne.s32.totalorder %s170, %s171
      %p180 = scmp.eq.s32.totalorder %s29, 0
      %p181 = por %p179, %p180
      %p182 = scmp.ne.s32.totalorder %s170, %s171
      %p183 = scmp.eq.s32.totalorder %s30, 1
      %p184 = por %p182, %p183
      %p186 = scmp.ne.s32.totalorder %s171, %s185
      %p187 = scmp.eq.s32.totalorder %s30, 0
      %p188 = por %p186, %p187
      %s190 = sadd.s32 %s189, 1
      %p193 = scmp.eq.s32.totalorder %s24, 1
      %p194 = scmp.ne.s32.totalorder %s189, %s191
      %p195 = scmp.eq.s32.totalorder %s24, 0
      %p196 = por %p194, %p195
      %p197 = scmp.ne.s32.totalorder %s189, %s191
      %p198 = scmp.eq.s32.totalorder %s29, 1
      %p199 = por %p197, %p198
      %p200 = scmp.ne.s32.totalorder %s191, %s192
      %p201 = scmp.eq.s32.totalorder %s29, 0
      %p202 = por %p200, %p201
      %p203 = scmp.ne.s32.totalorder %s191, %s192
      %p204 = scmp.eq.s32.totalorder %s30, 1
      %p205 = por %p203, %p204
      %p207 = scmp.ne.s32.totalorder %s192, %s206
      %p208 = scmp.eq.s32.totalorder %s30, 0
      %p209 = por %p207, %p208
      %s211 = sadd.s32 %s210, 1
      %p214 = scmp.eq.s32.totalorder %s24, 1
      %p215 = scmp.ne.s32.totalorder %s210, %s212
      %p216 = scmp.eq.s32.totalorder %s24, 0
      %p217 = por %p215, %p216
      %p218 = scmp.ne.s32.totalorder %s210, %s212
      %p219 = scmp.eq.s32.totalorder %s29, 1
      %p220 = por %p218, %p219
      %p221 = scmp.ne.s32.totalorder %s212, %s213
      %p222 = scmp.eq.s32.totalorder %s29, 0
      %p223 = por %p221, %p222
      %p224 = scmp.ne.s32.totalorder %s212, %s213
      %p225 = scmp.eq.s32.totalorder %s30, 1
      %p226 = por %p224, %p225
      %p228 = scmp.ne.s32.totalorder %s213, %s227
      %p229 = scmp.eq.s32.totalorder %s30, 0
      %p230 = por %p228, %p229
      %s232 = sadd.s32 %s231, 1
      %p235 = scmp.eq.s32.totalorder %s24, 1
      %p236 = scmp.ne.s32.totalorder %s231, %s233
      %p237 = scmp.eq.s32.totalorder %s24, 0
      %p238 = por %p236, %p237
      %p239 = scmp.ne.s32.totalorder %s231, %s233
      %p240 = scmp.eq.s32.totalorder %s29, 1
      %p241 = por %p239, %p240
      %p242 = scmp.ne.s32.totalorder %s233, %s234
      %p243 = scmp.eq.s32.totalorder %s29, 0
      %p244 = por %p242, %p243
      %p245 = scmp.ne.s32.totalorder %s233, %s234
      %p246 = scmp.eq.s32.totalorder %s30, 1
      %p247 = por %p245, %p246
      %p249 = scmp.ne.s32.totalorder %s234, %s248
      %p250 = scmp.eq.s32.totalorder %s30, 0
      %p251 = por %p249, %p250
      %s252 = ssub.s32 %s24, %s31
      %p253 = scmp.eq.s32.totalorder %s252, 0
      %s255 = sadd.s32 %s254, 1
      %s256 = scalar_select %p253, %s254, %s255
      %p259 = pneg %p253
      %p260 = scmp.eq.s32.totalorder %s24, 1
      %p261 = por %p259, %p260
      %p262 = scmp.ne.s32.totalorder %s254, %s257
      %p263 = scmp.eq.s32.totalorder %s24, 0
      %p264 = por %p262, %p263
      %p265 = scmp.ne.s32.totalorder %s254, %s257
      %p266 = scmp.eq.s32.totalorder %s29, 1
      %p267 = por %p265, %p266
      %p268 = scmp.ne.s32.totalorder %s257, %s258
      %p269 = scmp.eq.s32.totalorder %s29, 0
      %p270 = por %p268, %p269
      %p271 = scmp.ne.s32.totalorder %s257, %s258
      %p272 = scmp.eq.s32.totalorder %s30, 1
      %p273 = por %p271, %p272
      %p275 = scmp.ne.s32.totalorder %s258, %s274
      %p276 = scmp.eq.s32.totalorder %s30, 0
      %p277 = por %p275, %p276
      %s278 = ssub.s32 %s24, %s31
      %p279 = scmp.eq.s32.totalorder %s278, 0
      %s281 = sadd.s32 %s280, 1
      %s282 = scalar_select %p279, %s280, %s281
      %p285 = pneg %p279
      %p286 = scmp.eq.s32.totalorder %s24, 1
      %p287 = por %p285, %p286
      %p288 = scmp.ne.s32.totalorder %s280, %s283
      %p289 = scmp.eq.s32.totalorder %s24, 0
      %p290 = por %p288, %p289
      %p291 = scmp.ne.s32.totalorder %s280, %s283
      %p292 = scmp.eq.s32.totalorder %s29, 1
      %p293 = por %p291, %p292
      %p294 = scmp.ne.s32.totalorder %s283, %s284
      %p295 = scmp.eq.s32.totalorder %s29, 0
      %p296 = por %p294, %p295
      %p297 = scmp.ne.s32.totalorder %s283, %s284
      %p298 = scmp.eq.s32.totalorder %s30, 1
      %p299 = por %p297, %p298
      %p301 = scmp.ne.s32.totalorder %s284, %s300
      %p302 = scmp.eq.s32.totalorder %s30, 0
      %p303 = por %p301, %p302
      %p304 = scmp.le.s32.totalorder 1, %s24
      %p305 = scmp.lt.s32.totalorder %s24, 3
      %p306 = pnand %p304, %p305
      %p307 = pneg %p306
      // Predicated region
      $region9: #{tpu_custom_call.1} parent=5 // pred_check
        _
      $region10: #{tpu_custom_call.1} parent=5 // pred_check_branch
        %309 = sbr.rel (%p306) target = $region12
      $region11: #{tpu_custom_call.1} parent=5 // pred_region
        %s310 = ssub.s32 %s24, 1
        // Predicated region
        $region13: #{tpu_custom_call.1} parent=11 // pred_check
          %p311 = pneg %p45
        $region14: #{tpu_custom_call.1} parent=11 // pred_check_branch
          %313 = sbr.rel (%p311) target = $region16
        $region15: #{tpu_custom_call.1} parent=11 // pred_region
          _
        $region16: #{tpu_custom_call.1} parent=11 // pred_fallthru
          _
        // Predicated region
        $region17: #{tpu_custom_call.1} parent=11 // pred_check
          %p314 = pneg %p118
        $region18: #{tpu_custom_call.1} parent=11 // pred_check_branch
          %316 = sbr.rel (%p314) target = $region20
        $region19: #{tpu_custom_call.1} parent=11 // pred_region
          _
        $region20: #{tpu_custom_call.1} parent=11 // pred_fallthru
          _
        // Predicated region
        $region21: #{tpu_custom_call.1} parent=11 // pred_check
          %p317 = pneg %p139
        $region22: #{tpu_custom_call.1} parent=11 // pred_check_branch
          %319 = sbr.rel (%p317) target = $region24
        $region23: #{tpu_custom_call.1} parent=11 // pred_region
          _
        $region24: #{tpu_custom_call.1} parent=11 // pred_fallthru
          _
        // Predicated region
        $region25: #{tpu_custom_call.1} parent=11 // pred_check
          %p320 = pneg %p160
        $region26: #{tpu_custom_call.1} parent=11 // pred_check_branch
          %322 = sbr.rel (%p320) target = $region28
        $region27: #{tpu_custom_call.1} parent=11 // pred_region
          _
        $region28: #{tpu_custom_call.1} parent=11 // pred_fallthru
          _
        // Predicated region
        $region29: #{tpu_custom_call.1} parent=11 // pred_check
          %p323 = pneg %p181
        $region30: #{tpu_custom_call.1} parent=11 // pred_check_branch
          %325 = sbr.rel (%p323) target = $region32
        $region31: #{tpu_custom_call.1} parent=11 // pred_region
          _
        $region32: #{tpu_custom_call.1} parent=11 // pred_fallthru
          _
        // Predicated region
        $region33: #{tpu_custom_call.1} parent=11 // pred_check
          %p326 = pneg %p202
        $region34: #{tpu_custom_call.1} parent=11 // pred_check_branch
          %328 = sbr.rel (%p326) target = $region36
        $region35: #{tpu_custom_call.1} parent=11 // pred_region
          _
        $region36: #{tpu_custom_call.1} parent=11 // pred_fallthru
          _
        // Predicated region
        $region37: #{tpu_custom_call.1} parent=11 // pred_check
          %p329 = pneg %p223
        $region38: #{tpu_custom_call.1} parent=11 // pred_check_branch
          %331 = sbr.rel (%p329) target = $region40
        $region39: #{tpu_custom_call.1} parent=11 // pred_region
          _
        $region40: #{tpu_custom_call.1} parent=11 // pred_fallthru
          _
        // Predicated region
        $region41: #{tpu_custom_call.1} parent=11 // pred_check
          %p332 = pneg %p244
        $region42: #{tpu_custom_call.1} parent=11 // pred_check_branch
          %334 = sbr.rel (%p332) target = $region44
        $region43: #{tpu_custom_call.1} parent=11 // pred_region
          _
        $region44: #{tpu_custom_call.1} parent=11 // pred_fallthru
          _
      $region12: #{tpu_custom_call.1} parent=5 // pred_fallthru
        _
      %p335 = scmp.lt.s32.totalorder %s24, 2
      // Predicated region
      $region45: #{tpu_custom_call.1} parent=5 // pred_check
        %p336 = pneg %p335
      $region46: #{tpu_custom_call.1} parent=5 // pred_check_branch
        %338 = sbr.rel (%p336) target = $region48
      $region47: #{tpu_custom_call.1} parent=5 // pred_region
        // Predicated region
        $region49: #{tpu_custom_call.1} parent=47 // pred_check
          %p339 = pneg %p65
        $region50: #{tpu_custom_call.1} parent=47 // pred_check_branch
          %341 = sbr.rel (%p339) target = $region52
        $region51: #{tpu_custom_call.1} parent=47 // pred_region
          %p342 = scmp.lt.s32.totalorder %s24, 1
          %s343 = scalar_select %p342, %s24, 1
          %s344 = smul.addr %s343, 2
          %s345 = smul.addr %s344, 8
          %s346 = scalar_lea.vmem %s1, %s345
        $region52: #{tpu_custom_call.1} parent=47 // pred_fallthru
          _
        // Predicated region
        $region53: #{tpu_custom_call.1} parent=47 // pred_check
          %p347 = pneg %p91
        $region54: #{tpu_custom_call.1} parent=47 // pred_check_branch
          %349 = sbr.rel (%p347) target = $region56
        $region55: #{tpu_custom_call.1} parent=47 // pred_region
          %p350 = scmp.lt.s32.totalorder %s24, 1
          %s351 = scalar_select %p350, %s24, 1
          %s352 = smul.addr %s351, 4
          %s353 = scalar_lea.vmem %s2, %s352
        $region56: #{tpu_custom_call.1} parent=47 // pred_fallthru
          _
      $region48: #{tpu_custom_call.1} parent=5 // pred_fallthru
        _
      %p354 = scmp.le.s32.totalorder 1, %s24
      %p355 = scmp.lt.s32.totalorder %s24, 3
      %p356 = pnand %p354, %p355
      %p357 = pneg %p356
      // Predicated region
      $region57: #{tpu_custom_call.1} parent=5 // pred_check
        _
      $region58: #{tpu_custom_call.1} parent=5 // pred_check_branch
        %359 = sbr.rel (%p356) target = $region60
      $region59: #{tpu_custom_call.1} parent=5 // pred_region
        %s360 = ssub.s32 %s24, 1
        %p361 = pneg %p45
        %p362 = pneg %p42
        %p363 = scmp.lt.s32.totalorder %s29, 1
        %s364 = scalar_select %p363, %s29, 1
        %s365 = smul.addr %s364, 2
        %s366 = smul.addr %s365, 8
        %s367 = scalar_lea.vmem %s1, %s366
        %p368 = pneg %p71
        %p369 = pneg %p68
        %p370 = scmp.lt.s32.totalorder %s29, 1
        %s371 = scalar_select %p370, %s29, 1
        %s372 = smul.addr %s371, 4
        %s373 = scalar_lea.vmem %s2, %s372
        %p374 = pneg %p97
        %p375 = pneg %p94
        %p376 = pneg %p118
        %p377 = pneg %p115
        %p378 = pneg %p139
        %p379 = pneg %p136
        %p380 = pneg %p160
        %p381 = pneg %p157
        %p382 = pneg %p181
        %p383 = pneg %p178
        %p384 = pneg %p202
        %p385 = pneg %p199
        %p386 = pneg %p223
        %p387 = pneg %p220
        %p388 = pneg %p244
        %p389 = pneg %p241
        %p390 = pneg %p270
        %p391 = pneg %p267
        %s392 = sand.u32 %s257, 1
        %s393 = scalar_lea.sflag [#allocation3], %s392
        %s394 = sand.u32 %s257, 1
        %s395 = smul.addr %s394, 8
        %s396 = scalar_lea.vmem [#allocation2], %s395
        %p397 = pneg %p296
        %p398 = pneg %p293
        %s399 = sand.u32 %s283, 1
        %s400 = scalar_lea.sflag [#allocation5], %s399
        %s401 = sand.u32 %s283, 1
        %s402 = smul.addr %s401, 16
        %s403 = scalar_lea.vmem [#allocation4], %s402
        %p404 = scmp.lt.s32.totalorder %s29, 1
        %s405 = scalar_select %p404, %s29, 1
        %s406 = smul.addr %s405, 2
        %s407 = smul.addr %s406, 8
        %s408 = scalar_lea.vmem %s1, %s407
        %p409 = scmp.lt.s32.totalorder %s29, 1
        %s410 = scalar_select %p409, %s29, 1
        %s411 = smul.addr %s410, 4
        %s412 = scalar_lea.vmem %s2, %s411
        %v413 = vld [vmem:[%s0] sm:$0xff]
        %v414 = vld [vmem:[%s0 + $0x8] sm:$0xff]
        %v415 = vld [vmem:[%s5] sm:$0xf]
        %v416 = vld [vmem:[%s8] sm:$0x1]
        %v417 = vld [vmem:[%s3] sm:$0xff]
        %v418 = vld [vmem:[%s3 + $0x8] sm:$0xff]
        %v419 = vld [vmem:[%s3 + $0x10] sm:$0xff]
        %v420 = vld [vmem:[%s3 + $0x18] sm:$0xff]
        %v421 = vld [vmem:[%s3 + $0x20] sm:$0xff]
        %v422 = vld [vmem:[%s3 + $0x28] sm:$0xff]
        %v423 = vld [vmem:[%s3 + $0x30] sm:$0xff]
        %v424 = vld [vmem:[%s3 + $0x38] sm:$0xff]
        %v425 = vld [vmem:[%s3 + $0x40] sm:$0xff]
        %v426 = vld [vmem:[%s3 + $0x48] sm:$0xff]
        %v427 = vld [vmem:[%s3 + $0x50] sm:$0xff]
        %v428 = vld [vmem:[%s3 + $0x58] sm:$0xff]
        %v429 = vld [vmem:[%s3 + $0x60] sm:$0xff]
        %v430 = vld [vmem:[%s3 + $0x68] sm:$0xff]
        %v431 = vld [vmem:[%s3 + $0x70] sm:$0xff]
        %v432 = vld [vmem:[%s3 + $0x78] sm:$0xff]
        %v433 = vld [vmem:[%s4] sm:$0xff]
        %v434 = vld [vmem:[%s4 + $0x8] sm:$0xff]
        %v435 = vld [vmem:[%s4 + $0x10] sm:$0xff]
        %v436 = vld [vmem:[%s4 + $0x18] sm:$0xff]
        %v437 = vld [vmem:[%s4 + $0x20] sm:$0xff]
        %v438 = vld [vmem:[%s4 + $0x28] sm:$0xff]
        %v439 = vld [vmem:[%s4 + $0x30] sm:$0xff]
        %v440 = vld [vmem:[%s4 + $0x38] sm:$0xff]
        %v441 = vld [vmem:[%s4 + $0x40] sm:$0xff]
        %v442 = vld [vmem:[%s4 + $0x48] sm:$0xff]
        %v443 = vld [vmem:[%s4 + $0x50] sm:$0xff]
        %v444 = vld [vmem:[%s4 + $0x58] sm:$0xff]
        %v445 = vld [vmem:[%s4 + $0x60] sm:$0xff]
        %v446 = vld [vmem:[%s4 + $0x68] sm:$0xff]
        %v447 = vld [vmem:[%s4 + $0x70] sm:$0xff]
        %v448 = vld [vmem:[%s4 + $0x78] sm:$0xff]
        %v449 = vld [vmem:[%s6] sm:$0xff]
        %v450 = vld [vmem:[%s6 + $0x8] sm:$0xff]
        %v451 = vld [vmem:[%s6 + $0x10] sm:$0xff]
        %v452 = vld [vmem:[%s6 + $0x18] sm:$0xff]
        %v453 = vld [vmem:[%s6 + $0x20] sm:$0xff]
        %v454 = vld [vmem:[%s6 + $0x28] sm:$0xff]
        %v455 = vld [vmem:[%s6 + $0x30] sm:$0xff]
        %v456 = vld [vmem:[%s6 + $0x38] sm:$0xff]
        %v457 = vld [vmem:[%s6 + $0x40] sm:$0xff]
        %v458 = vld [vmem:[%s6 + $0x48] sm:$0xff]
        %v459 = vld [vmem:[%s6 + $0x50] sm:$0xff]
        %v460 = vld [vmem:[%s6 + $0x58] sm:$0xff]
        %v461 = vld [vmem:[%s6 + $0x60] sm:$0xff]
        %v462 = vld [vmem:[%s6 + $0x68] sm:$0xff]
        %v463 = vld [vmem:[%s6 + $0x70] sm:$0xff]
        %v464 = vld [vmem:[%s6 + $0x78] sm:$0xff]
        %v465 = vld [vmem:[%s7] sm:$0xff]
        %v466 = vld [vmem:[%s7 + $0x8] sm:$0xff]
        %v467 = vld [vmem:[%s7 + $0x10] sm:$0xff]
        %v468 = vld [vmem:[%s7 + $0x18] sm:$0xff]
        %v469 = vld [vmem:[%s7 + $0x20] sm:$0xff]
        %v470 = vld [vmem:[%s7 + $0x28] sm:$0xff]
        %v471 = vld [vmem:[%s7 + $0x30] sm:$0xff]
        %v472 = vld [vmem:[%s7 + $0x38] sm:$0xff]
        %v473 = vld [vmem:[%s7 + $0x40] sm:$0xff]
        %v474 = vld [vmem:[%s7 + $0x48] sm:$0xff]
        %v475 = vld [vmem:[%s7 + $0x50] sm:$0xff]
        %v476 = vld [vmem:[%s7 + $0x58] sm:$0xff]
        %v477 = vld [vmem:[%s7 + $0x60] sm:$0xff]
        %v478 = vld [vmem:[%s7 + $0x68] sm:$0xff]
        %v479 = vld [vmem:[%s7 + $0x70] sm:$0xff]
        %v480 = vld [vmem:[%s7 + $0x78] sm:$0xff]
        %v481 = vld [vmem:[%s9] sm:$0xff]
        %v482 = vld [vmem:[%s408] sm:$0xff]
        %v483 = vld [vmem:[%s408 + $0x8] sm:$0xff]
        %v485 = vlaneseq
        %v486 = vshrl.u32 %v485, 7
        %v487 = vsub.s32 0, %v486
        %v488 = vrot.slane %v416, %v487
        %vm490 = vcmask 31744
        %v492 = vsel %vm490, %v482, 0
        %v495 = vsel %vm490, %v483, 0
        %vm497 = vcmask 1043456
        %v499 = vsel %vm497, %v415, 0
        %501 = vmatprep.subr.mxu0 0.0
        %502 = vmatpush1.msra.mxu0 %v499
        %503 = vmatprep.subr.mxu0 0.0
        %504 = vmatpush1.msra.mxu0 0.0
        %505 = vmatprep.subr.mxu0 0.0
        %506 = vmatpush1.msra.mxu0 0.0
        %507 = vmatprep.subr.mxu0 0.0
        %508 = vmatpush1.msra.mxu0 0.0
        %509 = vmatprep.subr.mxu0 0.0
        %510 = vmatpush1.msra.mxu0 0.0
        %511 = vmatprep.subr.mxu0 0.0
        %512 = vmatpush1.msra.mxu0 0.0
        %513 = vmatprep.subr.mxu0 0.0
        %514 = vmatpush1.msra.mxu0 0.0
        %515 = vmatprep.subr.mxu0 0.0
        %516 = vmatpush1.msra.mxu0 0.0
        %517 = vmatprep.subr.mxu0 0.0
        %518 = vmatpush1.msra.mxu0 0.0
        %519 = vmatprep.subr.mxu0 0.0
        %520 = vmatpush1.msra.mxu0 0.0
        %521 = vmatprep.subr.mxu0 0.0
        %522 = vmatpush1.msra.mxu0 0.0
        %523 = vmatprep.subr.mxu0 0.0
        %524 = vmatpush1.msra.mxu0 0.0
        %525 = vmatprep.subr.mxu0 0.0
        %526 = vmatpush1.msra.mxu0 0.0
        %527 = vmatprep.subr.mxu0 0.0
        %528 = vmatpush1.msra.mxu0 0.0
        %529 = vmatprep.subr.mxu0 0.0
        %530 = vmatpush1.msra.mxu0 0.0
        %531 = vmatprep.subr.mxu0 0.0
        %532 = vmatpush1.msra.mxu0 0.0
        %533 = vmatprep.subr.mxu0 0.0
        %534 = vmatpush1.msra.mxu0 0.0
        %535 = vmatprep.subr.mxu0 0.0
        %536 = vmatpush1.msra.mxu0 0.0
        %537 = vmatprep.subr.mxu0 0.0
        %538 = vmatpush1.msra.mxu0 0.0
        %539 = vmatprep.subr.mxu0 0.0
        %540 = vmatpush1.msra.mxu0 0.0
        %541 = vmatprep.subr.mxu0 0.0
        %542 = vmatpush1.msra.mxu0 0.0
        %543 = vmatprep.subr.mxu0 0.0
        %544 = vmatpush1.msra.mxu0 0.0
        %545 = vmatprep.subr.mxu0 0.0
        %546 = vmatpush1.msra.mxu0 0.0
        %547 = vmatprep.subr.mxu0 0.0
        %548 = vmatpush1.msra.mxu0 0.0
        %549 = vmatprep.subr.mxu0 0.0
        %550 = vmatpush1.msra.mxu0 0.0
        %551 = vmatprep.subr.mxu0 0.0
        %552 = vmatpush1.msra.mxu0 0.0
        %553 = vmatprep.subr.mxu0 0.0
        %554 = vmatpush1.msra.mxu0 0.0
        %555 = vmatprep.subr.mxu0 0.0
        %556 = vmatpush1.msra.mxu0 0.0
        %557 = vmatprep.subr.mxu0 0.0
        %558 = vmatpush1.msra.mxu0 0.0
        %559 = vmatprep.subr.mxu0 0.0
        %560 = vmatpush1.msra.mxu0 0.0
        %561 = vmatprep.subr.mxu0 0.0
        %562 = vmatpush1.msra.mxu0 0.0
        %563 = vmatprep.subr.mxu0 0.0
        %564 = vmatpush1.msra.mxu0 0.0
        %565 = vmatprep.mubr.f32.mxu0 0.0
        %566 = vmatmul.mubr.f32.gmra.mrb[0].mxu0 %v492
        %v567 = vpop.f32.mrb[0].mxu0
        %v568 = vadd.f32 %v488, %v567
        %v569 = vpop.f32.mrb[0].mxu0
        %570 = vmatprep.mubr.f32.mxu0 0.0
        %571 = vmatmul.mubr.f32.gmra.mrb[0].mxu0 %v495
        %v572 = vpop.f32.mrb[0].mxu0
        %v573 = vadd.f32 %v488, %v572
        %v574 = vpop.f32.mrb[0].mxu0
        %575 = vdwg.mxu0
        %576 = vst [vmem:[%s403] sm:$0xff] %v568
        %577 = vst [vmem:[%s403 + $0x8] sm:$0xff] %v573
        %v578 = vld [vmem:[%s412] sm:$0xf]
        %vm579 = vcmask 130048
        %v581 = vsel %vm579, %v578, 0
        %583 = vmatprep.subr.mxu0 0.0
        %584 = vmatpush1.msra.mxu0 %v413
        %585 = vmatprep.subr.mxu0 0.0
        %586 = vmatpush1.msra.mxu0 %v414
        %587 = vmatprep.subr.mxu0 0.0
        %588 = vmatpush1.msra.mxu0 0.0
        %589 = vmatprep.subr.mxu0 0.0
        %590 = vmatpush1.msra.mxu0 0.0
        %591 = vmatprep.subr.mxu0 0.0
        %592 = vmatpush1.msra.mxu0 0.0
        %593 = vmatprep.subr.mxu0 0.0
        %594 = vmatpush1.msra.mxu0 0.0
        %595 = vmatprep.subr.mxu0 0.0
        %596 = vmatpush1.msra.mxu0 0.0
        %597 = vmatprep.subr.mxu0 0.0
        %598 = vmatpush1.msra.mxu0 0.0
        %599 = vmatprep.subr.mxu0 0.0
        %600 = vmatpush1.msra.mxu0 0.0
        %601 = vmatprep.subr.mxu0 0.0
        %602 = vmatpush1.msra.mxu0 0.0
        %603 = vmatprep.subr.mxu0 0.0
        %604 = vmatpush1.msra.mxu0 0.0
        %605 = vmatprep.subr.mxu0 0.0
        %606 = vmatpush1.msra.mxu0 0.0
        %607 = vmatprep.subr.mxu0 0.0
        %608 = vmatpush1.msra.mxu0 0.0
        %609 = vmatprep.subr.mxu0 0.0
        %610 = vmatpush1.msra.mxu0 0.0
        %611 = vmatprep.subr.mxu0 0.0
        %612 = vmatpush1.msra.mxu0 0.0
        %613 = vmatprep.subr.mxu0 0.0
        %614 = vmatpush1.msra.mxu0 0.0
        %615 = vmatprep.subr.mxu0 0.0
        %616 = vmatpush1.msra.mxu0 0.0
        %617 = vmatprep.subr.mxu0 0.0
        %618 = vmatpush1.msra.mxu0 0.0
        %619 = vmatprep.subr.mxu0 0.0
        %620 = vmatpush1.msra.mxu0 0.0
        %621 = vmatprep.subr.mxu0 0.0
        %622 = vmatpush1.msra.mxu0 0.0
        %623 = vmatprep.subr.mxu0 0.0
        %624 = vmatpush1.msra.mxu0 0.0
        %625 = vmatprep.subr.mxu0 0.0
        %626 = vmatpush1.msra.mxu0 0.0
        %627 = vmatprep.subr.mxu0 0.0
        %628 = vmatpush1.msra.mxu0 0.0
        %629 = vmatprep.subr.mxu0 0.0
        %630 = vmatpush1.msra.mxu0 0.0
        %631 = vmatprep.subr.mxu0 0.0
        %632 = vmatpush1.msra.mxu0 0.0
        %633 = vmatprep.subr.mxu0 0.0
        %634 = vmatpush1.msra.mxu0 0.0
        %635 = vmatprep.subr.mxu0 0.0
        %636 = vmatpush1.msra.mxu0 0.0
        %637 = vmatprep.subr.mxu0 0.0
        %638 = vmatpush1.msra.mxu0 0.0
        %639 = vmatprep.subr.mxu0 0.0
        %640 = vmatpush1.msra.mxu0 0.0
        %641 = vmatprep.subr.mxu0 0.0
        %642 = vmatpush1.msra.mxu0 0.0
        %643 = vmatprep.subr.mxu0 0.0
        %644 = vmatpush1.msra.mxu0 0.0
        %645 = vmatprep.subr.mxu0 0.0
        %646 = vmatpush1.msra.mxu0 0.0
        %647 = vmatprep.mubr.f32.mxu0 0.0
        %648 = vmatmul.mubr.f32.gmra.mrb[0].mxu0 %v581
        %v649 = vpop.f32.mrb[0].mxu0
        %v650 = vadd.f32 0.0, %v649
        %v651 = vpop.f32.mrb[0].mxu0
        %652 = vdwg.mxu0
        %654 = vset.pattern.permute.xlu0 0
        %655 = vperm.xlu0 %654, %v449
        %v656 = vpop.permute.xlu0 %655
        %659 = vset.pattern.permute.xlu0 0
        %660 = vperm.xlu0 %659, %v450
        %v661 = vpop.permute.xlu0 %660
        %664 = vset.pattern.permute.xlu0 0
        %665 = vperm.xlu0 %664, %v451
        %v666 = vpop.permute.xlu0 %665
        %669 = vset.pattern.permute.xlu0 0
        %670 = vperm.xlu0 %669, %v452
        %v671 = vpop.permute.xlu0 %670
        %674 = vset.pattern.permute.xlu0 0
        %675 = vperm.xlu0 %674, %v453
        %v676 = vpop.permute.xlu0 %675
        %679 = vset.pattern.permute.xlu0 0
        %680 = vperm.xlu0 %679, %v454
        %v681 = vpop.permute.xlu0 %680
        %684 = vset.pattern.permute.xlu0 0
        %685 = vperm.xlu0 %684, %v455
        %v686 = vpop.permute.xlu0 %685
        %689 = vset.pattern.permute.xlu0 0
        %690 = vperm.xlu0 %689, %v456
        %v691 = vpop.permute.xlu0 %690
        %694 = vset.pattern.permute.xlu0 0
        %695 = vperm.xlu0 %694, %v457
        %v696 = vpop.permute.xlu0 %695
        %699 = vset.pattern.permute.xlu0 0
        %700 = vperm.xlu0 %699, %v458
        %v701 = vpop.permute.xlu0 %700
        %704 = vset.pattern.permute.xlu0 0
        %705 = vperm.xlu0 %704, %v459
        %v706 = vpop.permute.xlu0 %705
        %709 = vset.pattern.permute.xlu0 0
        %710 = vperm.xlu0 %709, %v460
        %v711 = vpop.permute.xlu0 %710
        %714 = vset.pattern.permute.xlu0 0
        %715 = vperm.xlu0 %714, %v461
        %v716 = vpop.permute.xlu0 %715
        %719 = vset.pattern.permute.xlu0 0
        %720 = vperm.xlu0 %719, %v462
        %v721 = vpop.permute.xlu0 %720
        %724 = vset.pattern.permute.xlu0 0
        %725 = vperm.xlu0 %724, %v463
        %v726 = vpop.permute.xlu0 %725
        %729 = vset.pattern.permute.xlu0 0
        %730 = vperm.xlu0 %729, %v464
        %v731 = vpop.permute.xlu0 %730
        %v734 = vsel %vm490, %v417, 0
        %v737 = vsel %vm490, %v418, 0
        %v740 = vsel %vm490, %v419, 0
        %v743 = vsel %vm490, %v420, 0
        %v746 = vsel %vm490, %v421, 0
        %v749 = vsel %vm490, %v422, 0
        %v752 = vsel %vm490, %v423, 0
        %v755 = vsel %vm490, %v424, 0
        %v758 = vsel %vm490, %v425, 0
        %v761 = vsel %vm490, %v426, 0
        %v764 = vsel %vm490, %v427, 0
        %v767 = vsel %vm490, %v428, 0
        %v770 = vsel %vm490, %v429, 0
        %v773 = vsel %vm490, %v430, 0
        %v776 = vsel %vm490, %v431, 0
        %v779 = vsel %vm490, %v432, 0
        %v782 = vsel %vm497, %v650, 0
        %784 = vmatprep.subr.mxu0 0.0
        %785 = vmatpush1.msra.mxu0 %v782
        %786 = vmatprep.subr.mxu0 0.0
        %787 = vmatpush1.msra.mxu0 0.0
        %788 = vmatprep.subr.mxu0 0.0
        %789 = vmatpush1.msra.mxu0 0.0
        %790 = vmatprep.subr.mxu0 0.0
        %791 = vmatpush1.msra.mxu0 0.0
        %792 = vmatprep.subr.mxu0 0.0
        %793 = vmatpush1.msra.mxu0 0.0
        %794 = vmatprep.subr.mxu0 0.0
        %795 = vmatpush1.msra.mxu0 0.0
        %796 = vmatprep.subr.mxu0 0.0
        %797 = vmatpush1.msra.mxu0 0.0
        %798 = vmatprep.subr.mxu0 0.0
        %799 = vmatpush1.msra.mxu0 0.0
        %800 = vmatprep.subr.mxu0 0.0
        %801 = vmatpush1.msra.mxu0 0.0
        %802 = vmatprep.subr.mxu0 0.0
        %803 = vmatpush1.msra.mxu0 0.0
        %804 = vmatprep.subr.mxu0 0.0
        %805 = vmatpush1.msra.mxu0 0.0
        %806 = vmatprep.subr.mxu0 0.0
        %807 = vmatpush1.msra.mxu0 0.0
        %808 = vmatprep.subr.mxu0 0.0
        %809 = vmatpush1.msra.mxu0 0.0
        %810 = vmatprep.subr.mxu0 0.0
        %811 = vmatpush1.msra.mxu0 0.0
        %812 = vmatprep.subr.mxu0 0.0
        %813 = vmatpush1.msra.mxu0 0.0
        %814 = vmatprep.subr.mxu0 0.0
        %815 = vmatpush1.msra.mxu0 0.0
        %816 = vmatprep.subr.mxu0 0.0
        %817 = vmatpush1.msra.mxu0 0.0
        %818 = vmatprep.subr.mxu0 0.0
        %819 = vmatpush1.msra.mxu0 0.0
        %820 = vmatprep.subr.mxu0 0.0
        %821 = vmatpush1.msra.mxu0 0.0
        %822 = vmatprep.subr.mxu0 0.0
        %823 = vmatpush1.msra.mxu0 0.0
        %824 = vmatprep.subr.mxu0 0.0
        %825 = vmatpush1.msra.mxu0 0.0
        %826 = vmatprep.subr.mxu0 0.0
        %827 = vmatpush1.msra.mxu0 0.0
        %828 = vmatprep.subr.mxu0 0.0
        %829 = vmatpush1.msra.mxu0 0.0
        %830 = vmatprep.subr.mxu0 0.0
        %831 = vmatpush1.msra.mxu0 0.0
        %832 = vmatprep.subr.mxu0 0.0
        %833 = vmatpush1.msra.mxu0 0.0
        %834 = vmatprep.subr.mxu0 0.0
        %835 = vmatpush1.msra.mxu0 0.0
        %836 = vmatprep.subr.mxu0 0.0
        %837 = vmatpush1.msra.mxu0 0.0
        %838 = vmatprep.subr.mxu0 0.0
        %839 = vmatpush1.msra.mxu0 0.0
        %840 = vmatprep.subr.mxu0 0.0
        %841 = vmatpush1.msra.mxu0 0.0
        %842 = vmatprep.subr.mxu0 0.0
        %843 = vmatpush1.msra.mxu0 0.0
        %844 = vmatprep.subr.mxu0 0.0
        %845 = vmatpush1.msra.mxu0 0.0
        %846 = vmatprep.subr.mxu0 0.0
        %847 = vmatpush1.msra.mxu0 0.0
        %848 = vmatprep.mubr.f32.mxu0 0.0
        %849 = vmatmul.mubr.f32.gmra.mrb[0].mxu0 %v734
        %v850 = vpop.f32.mrb[0].mxu0
        %v851 = vadd.f32 %v656, %v850
        %v852 = vpop.f32.mrb[0].mxu0
        %853 = vmatprep.mubr.f32.mxu0 0.0
        %854 = vmatmul.mubr.f32.gmra.mrb[0].mxu0 %v737
        %v855 = vpop.f32.mrb[0].mxu0
        %v856 = vadd.f32 %v661, %v855
        %v857 = vpop.f32.mrb[0].mxu0
        %858 = vmatprep.mubr.f32.mxu0 0.0
        %859 = vmatmul.mubr.f32.gmra.mrb[0].mxu0 %v740
        %v860 = vpop.f32.mrb[0].mxu0
        %v861 = vadd.f32 %v666, %v860
        %v862 = vpop.f32.mrb[0].mxu0
        %863 = vmatprep.mubr.f32.mxu0 0.0
        %864 = vmatmul.mubr.f32.gmra.mrb[0].mxu0 %v743
        %v865 = vpop.f32.mrb[0].mxu0
        %v866 = vadd.f32 %v671, %v865
        %v867 = vpop.f32.mrb[0].mxu0
        %868 = vmatprep.mubr.f32.mxu0 0.0
        %869 = vmatmul.mubr.f32.gmra.mrb[0].mxu0 %v746
        %v870 = vpop.f32.mrb[0].mxu0
        %v871 = vadd.f32 %v676, %v870
        %v872 = vpop.f32.mrb[0].mxu0
        %873 = vmatprep.mubr.f32.mxu0 0.0
        %874 = vmatmul.mubr.f32.gmra.mrb[0].mxu0 %v749
        %v875 = vpop.f32.mrb[0].mxu0
        %v876 = vadd.f32 %v681, %v875
        %v877 = vpop.f32.mrb[0].mxu0
        %878 = vmatprep.mubr.f32.mxu0 0.0
        %879 = vmatmul.mubr.f32.gmra.mrb[0].mxu0 %v752
        %v880 = vpop.f32.mrb[0].mxu0
        %v881 = vadd.f32 %v686, %v880
        %v882 = vpop.f32.mrb[0].mxu0
        %883 = vmatprep.mubr.f32.mxu0 0.0
        %884 = vmatmul.mubr.f32.gmra.mrb[0].mxu0 %v755
        %v885 = vpop.f32.mrb[0].mxu0
        %v886 = vadd.f32 %v691, %v885
        %v887 = vpop.f32.mrb[0].mxu0
        %888 = vmatprep.mubr.f32.mxu0 0.0
        %889 = vmatmul.mubr.f32.gmra.mrb[0].mxu0 %v758
        %v890 = vpop.f32.mrb[0].mxu0
        %v891 = vadd.f32 %v696, %v890
        %v892 = vpop.f32.mrb[0].mxu0
        %893 = vmatprep.mubr.f32.mxu0 0.0
        %894 = vmatmul.mubr.f32.gmra.mrb[0].mxu0 %v761
        %v895 = vpop.f32.mrb[0].mxu0
        %v896 = vadd.f32 %v701, %v895
        %v897 = vpop.f32.mrb[0].mxu0
        %898 = vmatprep.mubr.f32.mxu0 0.0
        %899 = vmatmul.mubr.f32.gmra.mrb[0].mxu0 %v764
        %v900 = vpop.f32.mrb[0].mxu0
        %v901 = vadd.f32 %v706, %v900
        %v902 = vpop.f32.mrb[0].mxu0
        %903 = vmatprep.mubr.f32.mxu0 0.0
        %904 = vmatmul.mubr.f32.gmra.mrb[0].mxu0 %v767
        %v905 = vpop.f32.mrb[0].mxu0
        %v906 = vadd.f32 %v711, %v905
        %v907 = vpop.f32.mrb[0].mxu0
        %908 = vmatprep.mubr.f32.mxu0 0.0
        %909 = vmatmul.mubr.f32.gmra.mrb[0].mxu0 %v770
        %v910 = vpop.f32.mrb[0].mxu0
        %v911 = vadd.f32 %v716, %v910
        %v912 = vpop.f32.mrb[0].mxu0
        %913 = vmatprep.mubr.f32.mxu0 0.0
        %914 = vmatmul.mubr.f32.gmra.mrb[0].mxu0 %v773
        %v915 = vpop.f32.mrb[0].mxu0
        %v916 = vadd.f32 %v721, %v915
        %v917 = vpop.f32.mrb[0].mxu0
        %918 = vmatprep.mubr.f32.mxu0 0.0
        %919 = vmatmul.mubr.f32.gmra.mrb[0].mxu0 %v776
        %v920 = vpop.f32.mrb[0].mxu0
        %v921 = vadd.f32 %v726, %v920
        %v922 = vpop.f32.mrb[0].mxu0
        %923 = vmatprep.mubr.f32.mxu0 0.0
        %924 = vmatmul.mubr.f32.gmra.mrb[0].mxu0 %v779
        %v925 = vpop.f32.mrb[0].mxu0
        %v926 = vadd.f32 %v731, %v925
        %v927 = vpop.f32.mrb[0].mxu0
        %928 = vdwg.mxu0
        %930 = vset.pattern.permute.xlu0 0
        %931 = vperm.xlu0 %930, %v465
        %v932 = vpop.permute.xlu0 %931
        %935 = vset.pattern.permute.xlu0 0
        %936 = vperm.xlu0 %935, %v466
        %v937 = vpop.permute.xlu0 %936
        %940 = vset.pattern.permute.xlu0 0
        %941 = vperm.xlu0 %940, %v467
        %v942 = vpop.permute.xlu0 %941
        %945 = vset.pattern.permute.xlu0 0
        %946 = vperm.xlu0 %945, %v468
        %v947 = vpop.permute.xlu0 %946
        %950 = vset.pattern.permute.xlu0 0
        %951 = vperm.xlu0 %950, %v469
        %v952 = vpop.permute.xlu0 %951
        %955 = vset.pattern.permute.xlu0 0
        %956 = vperm.xlu0 %955, %v470
        %v957 = vpop.permute.xlu0 %956
        %960 = vset.pattern.permute.xlu0 0
        %961 = vperm.xlu0 %960, %v471
        %v962 = vpop.permute.xlu0 %961
        %965 = vset.pattern.permute.xlu0 0
        %966 = vperm.xlu0 %965, %v472
        %v967 = vpop.permute.xlu0 %966
        %970 = vset.pattern.permute.xlu0 0
        %971 = vperm.xlu0 %970, %v473
        %v972 = vpop.permute.xlu0 %971
        %975 = vset.pattern.permute.xlu0 0
        %976 = vperm.xlu0 %975, %v474
        %v977 = vpop.permute.xlu0 %976
        %980 = vset.pattern.permute.xlu0 0
        %981 = vperm.xlu0 %980, %v475
        %v982 = vpop.permute.xlu0 %981
        %985 = vset.pattern.permute.xlu0 0
        %986 = vperm.xlu0 %985, %v476
        %v987 = vpop.permute.xlu0 %986
        %990 = vset.pattern.permute.xlu0 0
        %991 = vperm.xlu0 %990, %v477
        %v992 = vpop.permute.xlu0 %991
        %995 = vset.pattern.permute.xlu0 0
        %996 = vperm.xlu0 %995, %v478
        %v997 = vpop.permute.xlu0 %996
        %1000 = vset.pattern.permute.xlu0 0
        %1001 = vperm.xlu0 %1000, %v479
        %v1002 = vpop.permute.xlu0 %1001
        %1005 = vset.pattern.permute.xlu0 0
        %1006 = vperm.xlu0 %1005, %v480
        %v1007 = vpop.permute.xlu0 %1006
        %1009 = vrot.lane.b32.xlu0 %v650, 96
        %v1010 = vpop.permute.xlu0 %1009
        %v1012 = vsel %vm490, %v433, 0
        %v1015 = vsel %vm490, %v434, 0
        %v1018 = vsel %vm490, %v435, 0
        %v1021 = vsel %vm490, %v436, 0
        %v1024 = vsel %vm490, %v437, 0
        %v1027 = vsel %vm490, %v438, 0
        %v1030 = vsel %vm490, %v439, 0
        %v1033 = vsel %vm490, %v440, 0
        %v1036 = vsel %vm490, %v441, 0
        %v1039 = vsel %vm490, %v442, 0
        %v1042 = vsel %vm490, %v443, 0
        %v1045 = vsel %vm490, %v444, 0
        %v1048 = vsel %vm490, %v445, 0
        %v1051 = vsel %vm490, %v446, 0
        %v1054 = vsel %vm490, %v447, 0
        %v1057 = vsel %vm490, %v448, 0
        %v1059 = vsel %vm497, %v1010, 0
        %1061 = vmatprep.subr.mxu0 0.0
        %1062 = vmatpush1.msra.mxu0 %v1059
        %1063 = vmatprep.subr.mxu0 0.0
        %1064 = vmatpush1.msra.mxu0 0.0
        %1065 = vmatprep.subr.mxu0 0.0
        %1066 = vmatpush1.msra.mxu0 0.0
        %1067 = vmatprep.subr.mxu0 0.0
        %1068 = vmatpush1.msra.mxu0 0.0
        %1069 = vmatprep.subr.mxu0 0.0
        %1070 = vmatpush1.msra.mxu0 0.0
        %1071 = vmatprep.subr.mxu0 0.0
        %1072 = vmatpush1.msra.mxu0 0.0
        %1073 = vmatprep.subr.mxu0 0.0
        %1074 = vmatpush1.msra.mxu0 0.0
        %1075 = vmatprep.subr.mxu0 0.0
        %1076 = vmatpush1.msra.mxu0 0.0
        %1077 = vmatprep.subr.mxu0 0.0
        %1078 = vmatpush1.msra.mxu0 0.0
        %1079 = vmatprep.subr.mxu0 0.0
        %1080 = vmatpush1.msra.mxu0 0.0
        %1081 = vmatprep.subr.mxu0 0.0
        %1082 = vmatpush1.msra.mxu0 0.0
        %1083 = vmatprep.subr.mxu0 0.0
        %1084 = vmatpush1.msra.mxu0 0.0
        %1085 = vmatprep.subr.mxu0 0.0
        %1086 = vmatpush1.msra.mxu0 0.0
        %1087 = vmatprep.subr.mxu0 0.0
        %1088 = vmatpush1.msra.mxu0 0.0
        %1089 = vmatprep.subr.mxu0 0.0
        %1090 = vmatpush1.msra.mxu0 0.0
        %1091 = vmatprep.subr.mxu0 0.0
        %1092 = vmatpush1.msra.mxu0 0.0
        %1093 = vmatprep.subr.mxu0 0.0
        %1094 = vmatpush1.msra.mxu0 0.0
        %1095 = vmatprep.subr.mxu0 0.0
        %1096 = vmatpush1.msra.mxu0 0.0
        %1097 = vmatprep.subr.mxu0 0.0
        %1098 = vmatpush1.msra.mxu0 0.0
        %1099 = vmatprep.subr.mxu0 0.0
        %1100 = vmatpush1.msra.mxu0 0.0
        %1101 = vmatprep.subr.mxu0 0.0
        %1102 = vmatpush1.msra.mxu0 0.0
        %1103 = vmatprep.subr.mxu0 0.0
        %1104 = vmatpush1.msra.mxu0 0.0
        %1105 = vmatprep.subr.mxu0 0.0
        %1106 = vmatpush1.msra.mxu0 0.0
        %1107 = vmatprep.subr.mxu0 0.0
        %1108 = vmatpush1.msra.mxu0 0.0
        %1109 = vmatprep.subr.mxu0 0.0
        %1110 = vmatpush1.msra.mxu0 0.0
        %1111 = vmatprep.subr.mxu0 0.0
        %1112 = vmatpush1.msra.mxu0 0.0
        %1113 = vmatprep.subr.mxu0 0.0
        %1114 = vmatpush1.msra.mxu0 0.0
        %1115 = vmatprep.subr.mxu0 0.0
        %1116 = vmatpush1.msra.mxu0 0.0
        %1117 = vmatprep.subr.mxu0 0.0
        %1118 = vmatpush1.msra.mxu0 0.0
        %1119 = vmatprep.subr.mxu0 0.0
        %1120 = vmatpush1.msra.mxu0 0.0
        %1121 = vmatprep.subr.mxu0 0.0
        %1122 = vmatpush1.msra.mxu0 0.0
        %1123 = vmatprep.subr.mxu0 0.0
        %1124 = vmatpush1.msra.mxu0 0.0
        %1125 = vmatprep.mubr.f32.mxu0 0.0
        %1126 = vmatmul.mubr.f32.gmra.mrb[0].mxu0 %v1012
        %v1127 = vpop.f32.mrb[0].mxu0
        %v1128 = vadd.f32 %v932, %v1127
        %v1129 = vpop.f32.mrb[0].mxu0
        %1130 = vmatprep.mubr.f32.mxu0 0.0
        %1131 = vmatmul.mubr.f32.gmra.mrb[0].mxu0 %v1015
        %v1132 = vpop.f32.mrb[0].mxu0
        %v1133 = vadd.f32 %v937, %v1132
        %v1134 = vpop.f32.mrb[0].mxu0
        %1135 = vmatprep.mubr.f32.mxu0 0.0
        %1136 = vmatmul.mubr.f32.gmra.mrb[0].mxu0 %v1018
        %v1137 = vpop.f32.mrb[0].mxu0
        %v1138 = vadd.f32 %v942, %v1137
        %v1139 = vpop.f32.mrb[0].mxu0
        %1140 = vmatprep.mubr.f32.mxu0 0.0
        %1141 = vmatmul.mubr.f32.gmra.mrb[0].mxu0 %v1021
        %v1142 = vpop.f32.mrb[0].mxu0
        %v1143 = vadd.f32 %v947, %v1142
        %v1144 = vpop.f32.mrb[0].mxu0
        %1145 = vmatprep.mubr.f32.mxu0 0.0
        %1146 = vmatmul.mubr.f32.gmra.mrb[0].mxu0 %v1024
        %v1147 = vpop.f32.mrb[0].mxu0
        %v1148 = vadd.f32 %v952, %v1147
        %v1149 = vpop.f32.mrb[0].mxu0
        %1150 = vmatprep.mubr.f32.mxu0 0.0
        %1151 = vmatmul.mubr.f32.gmra.mrb[0].mxu0 %v1027
        %v1152 = vpop.f32.mrb[0].mxu0
        %v1153 = vadd.f32 %v957, %v1152
        %v1154 = vpop.f32.mrb[0].mxu0
        %1155 = vmatprep.mubr.f32.mxu0 0.0
        %1156 = vmatmul.mubr.f32.gmra.mrb[0].mxu0 %v1030
        %v1157 = vpop.f32.mrb[0].mxu0
        %v1158 = vadd.f32 %v962, %v1157
        %v1159 = vpop.f32.mrb[0].mxu0
        %1160 = vmatprep.mubr.f32.mxu0 0.0
        %1161 = vmatmul.mubr.f32.gmra.mrb[0].mxu0 %v1033
        %v1162 = vpop.f32.mrb[0].mxu0
        %v1163 = vadd.f32 %v967, %v1162
        %v1164 = vpop.f32.mrb[0].mxu0
        %1165 = vmatprep.mubr.f32.mxu0 0.0
        %1166 = vmatmul.mubr.f32.gmra.mrb[0].mxu0 %v1036
        %v1167 = vpop.f32.mrb[0].mxu0
        %v1168 = vadd.f32 %v972, %v1167
        %v1169 = vpop.f32.mrb[0].mxu0
        %1170 = vmatprep.mubr.f32.mxu0 0.0
        %1171 = vmatmul.mubr.f32.gmra.mrb[0].mxu0 %v1039
        %v1172 = vpop.f32.mrb[0].mxu0
        %v1173 = vadd.f32 %v977, %v1172
        %v1174 = vpop.f32.mrb[0].mxu0
        %1175 = vmatprep.mubr.f32.mxu0 0.0
        %1176 = vmatmul.mubr.f32.gmra.mrb[0].mxu0 %v1042
        %v1177 = vpop.f32.mrb[0].mxu0
        %v1178 = vadd.f32 %v982, %v1177
        %v1179 = vpop.f32.mrb[0].mxu0
        %1180 = vmatprep.mubr.f32.mxu0 0.0
        %1181 = vmatmul.mubr.f32.gmra.mrb[0].mxu0 %v1045
        %v1182 = vpop.f32.mrb[0].mxu0
        %v1183 = vadd.f32 %v987, %v1182
        %v1184 = vpop.f32.mrb[0].mxu0
        %1185 = vmatprep.mubr.f32.mxu0 0.0
        %1186 = vmatmul.mubr.f32.gmra.mrb[0].mxu0 %v1048
        %v1187 = vpop.f32.mrb[0].mxu0
        %v1188 = vadd.f32 %v992, %v1187
        %v1189 = vpop.f32.mrb[0].mxu0
        %1190 = vmatprep.mubr.f32.mxu0 0.0
        %1191 = vmatmul.mubr.f32.gmra.mrb[0].mxu0 %v1051
        %v1192 = vpop.f32.mrb[0].mxu0
        %v1193 = vadd.f32 %v997, %v1192
        %v1194 = vpop.f32.mrb[0].mxu0
        %1195 = vmatprep.mubr.f32.mxu0 0.0
        %1196 = vmatmul.mubr.f32.gmra.mrb[0].mxu0 %v1054
        %v1197 = vpop.f32.mrb[0].mxu0
        %v1198 = vadd.f32 %v1002, %v1197
        %v1199 = vpop.f32.mrb[0].mxu0
        %1200 = vmatprep.mubr.f32.mxu0 0.0
        %1201 = vmatmul.mubr.f32.gmra.mrb[0].mxu0 %v1057
        %v1202 = vpop.f32.mrb[0].mxu0
        %v1203 = vadd.f32 %v1007, %v1202
        %v1204 = vpop.f32.mrb[0].mxu0
        %1205 = vdwg.mxu0
        %v1206 = vmul.f32 %v851, %v1128
        %v1207 = vmul.f32 %v856, %v1133
        %v1208 = vmul.f32 %v861, %v1138
        %v1209 = vmul.f32 %v866, %v1143
        %v1210 = vmul.f32 %v871, %v1148
        %v1211 = vmul.f32 %v876, %v1153
        %v1212 = vmul.f32 %v881, %v1158
        %v1213 = vmul.f32 %v886, %v1163
        %v1214 = vmul.f32 %v891, %v1168
        %v1215 = vmul.f32 %v896, %v1173
        %v1216 = vmul.f32 %v901, %v1178
        %v1217 = vmul.f32 %v906, %v1183
        %v1218 = vmul.f32 %v911, %v1188
        %v1219 = vmul.f32 %v916, %v1193
        %v1220 = vmul.f32 %v921, %v1198
        %v1221 = vmul.f32 %v926, %v1203
        %1222 = vmatprep.subr.mxu0 0.0
        %1223 = vmatpush1.msra.mxu0 %v1206
        %1224 = vmatprep.subr.mxu0 0.0
        %1225 = vmatpush1.msra.mxu0 %v1207
        %1226 = vmatprep.subr.mxu0 0.0
        %1227 = vmatpush1.msra.mxu0 %v1208
        %1228 = vmatprep.subr.mxu0 0.0
        %1229 = vmatpush1.msra.mxu0 %v1209
        %1230 = vmatprep.subr.mxu0 0.0
        %1231 = vmatpush1.msra.mxu0 %v1210
        %1232 = vmatprep.subr.mxu0 0.0
        %1233 = vmatpush1.msra.mxu0 %v1211
        %1234 = vmatprep.subr.mxu0 0.0
        %1235 = vmatpush1.msra.mxu0 %v1212
        %1236 = vmatprep.subr.mxu0 0.0
        %1237 = vmatpush1.msra.mxu0 %v1213
        %1238 = vmatprep.subr.mxu0 0.0
        %1239 = vmatpush1.msra.mxu0 %v1214
        %1240 = vmatprep.subr.mxu0 0.0
        %1241 = vmatpush1.msra.mxu0 %v1215
        %1242 = vmatprep.subr.mxu0 0.0
        %1243 = vmatpush1.msra.mxu0 %v1216
        %1244 = vmatprep.subr.mxu0 0.0
        %1245 = vmatpush1.msra.mxu0 %v1217
        %1246 = vmatprep.subr.mxu0 0.0
        %1247 = vmatpush1.msra.mxu0 %v1218
        %1248 = vmatprep.subr.mxu0 0.0
        %1249 = vmatpush1.msra.mxu0 %v1219
        %1250 = vmatprep.subr.mxu0 0.0
        %1251 = vmatpush1.msra.mxu0 %v1220
        %1252 = vmatprep.subr.mxu0 0.0
        %1253 = vmatpush1.msra.mxu0 %v1221
        %1254 = vmatprep.subr.mxu0 0.0
        %1255 = vmatpush1.msra.mxu0 0.0
        %1256 = vmatprep.subr.mxu0 0.0
        %1257 = vmatpush1.msra.mxu0 0.0
        %1258 = vmatprep.subr.mxu0 0.0
        %1259 = vmatpush1.msra.mxu0 0.0
        %1260 = vmatprep.subr.mxu0 0.0
        %1261 = vmatpush1.msra.mxu0 0.0
        %1262 = vmatprep.subr.mxu0 0.0
        %1263 = vmatpush1.msra.mxu0 0.0
        %1264 = vmatprep.subr.mxu0 0.0
        %1265 = vmatpush1.msra.mxu0 0.0
        %1266 = vmatprep.subr.mxu0 0.0
        %1267 = vmatpush1.msra.mxu0 0.0
        %1268 = vmatprep.subr.mxu0 0.0
        %1269 = vmatpush1.msra.mxu0 0.0
        %1270 = vmatprep.subr.mxu0 0.0
        %1271 = vmatpush1.msra.mxu0 0.0
        %1272 = vmatprep.subr.mxu0 0.0
        %1273 = vmatpush1.msra.mxu0 0.0
        %1274 = vmatprep.subr.mxu0 0.0
        %1275 = vmatpush1.msra.mxu0 0.0
        %1276 = vmatprep.subr.mxu0 0.0
        %1277 = vmatpush1.msra.mxu0 0.0
        %1278 = vmatprep.subr.mxu0 0.0
        %1279 = vmatpush1.msra.mxu0 0.0
        %1280 = vmatprep.subr.mxu0 0.0
        %1281 = vmatpush1.msra.mxu0 0.0
        %1282 = vmatprep.subr.mxu0 0.0
        %1283 = vmatpush1.msra.mxu0 0.0
        %1284 = vmatprep.subr.mxu0 0.0
        %1285 = vmatpush1.msra.mxu0 0.0
        %1286 = vmatprep.mubr.f32.mxu0 0.0
        %1287 = vmatmul.mubr.f32.gmra.mrb[0].mxu0 %v481
        %v1288 = vpop.f32.mrb[0].mxu0
        %v1289 = vadd.f32 0.0, %v1288
        %v1290 = vpop.f32.mrb[0].mxu0
        %1291 = vdwg.mxu0
        %vm1292 = vcmask 261120
        %v1293 = vsel %vm1292, %v1289, -inf
        %1294 = vmax.xlane.f32.xlu0 %v1293
        %v1295 = vpop.xlane.xlu0 %1294
        %v1296 = vsub.f32 %v1289, %v1295
        %v1297 = vmul.f32 %v1296, 1.442695
        %v1298 = vpow.pop %v1297
        %v1299 = vsel %vm1292, %v1298, 0.0
        %1300 = vadd.xlane.f32.xlu0 %v1299
        %v1301 = vpop.xlane.xlu0 %1300
        %v1302 = vrcp.pop %v1301
        %v1303 = vmul.f32 %v1298, %v1302
        %1304 = vst.msk [vmem:[%s396] sm:$0xff] %vm1292, %v1303
        %s1305 = sand.u32 %s257, 1
        %s1306 = scalar_lea.sflag [#allocation3], %s1305
        %s1307 = sand.u32 %s257, 1
        %s1308 = smul.addr %s1307, 8
        %s1309 = scalar_lea.vmem [#allocation2], %s1308
        %s1310 = sand.u32 %s283, 1
        %s1311 = scalar_lea.sflag [#allocation5], %s1310
        %s1312 = sand.u32 %s283, 1
        %s1313 = smul.addr %s1312, 16
        %s1314 = scalar_lea.vmem [#allocation4], %s1313
        // Predicated region
        $region61: #{tpu_custom_call.1} parent=59 // pred_check
          %p1315 = pneg %p267
        $region62: #{tpu_custom_call.1} parent=59 // pred_check_branch
          %1317 = sbr.rel (%p1315) target = $region64
        $region63: #{tpu_custom_call.1} parent=59 // pred_region
          %s1319 = ssub.s32 128, 128
          %1320 = vsyncadd %s1306, %s1319
          %s1321 = smul.addr %s29, 128
          %s1322 = scalar_lea.hbm %s10, %s1321
          %s1324 = sshll.u32 %s1309, 4
          %s1325 = int_to_ptr.vmem [resolvable:$true] %s1324
          %1327 = dma.vmem_to_hbm [thread:$0]  %s1325, 128, %s1322, %s1306
        $region64: #{tpu_custom_call.1} parent=59 // pred_fallthru
          _
        // Predicated region
        $region65: #{tpu_custom_call.1} parent=59 // pred_check
          %p1328 = pneg %p293
        $region66: #{tpu_custom_call.1} parent=59 // pred_check_branch
          %1330 = sbr.rel (%p1328) target = $region68
        $region67: #{tpu_custom_call.1} parent=59 // pred_region
          %s1332 = ssub.s32 256, 256
          %1333 = vsyncadd %s1311, %s1332
          %s1334 = smul.addr %s29, 2
          %s1335 = smul.addr %s1334, 128
          %s1336 = scalar_lea.hbm %s11, %s1335
          %s1337 = sshll.u32 %s1314, 4
          %s1338 = int_to_ptr.vmem [resolvable:$true] %s1337
          %1343 = dma.vmem_to_hbm [thread:$0]  %s1338, 256, %s1336, %s1311, 128, 128, 8
        $region68: #{tpu_custom_call.1} parent=59 // pred_fallthru
          _
      $region60: #{tpu_custom_call.1} parent=5 // pred_fallthru
        _
      %p1344 = scmp.le.s32.totalorder 2, %s24
      // Predicated region
      $region69: #{tpu_custom_call.1} parent=5 // pred_check
        %p1345 = pneg %p1344
      $region70: #{tpu_custom_call.1} parent=5 // pred_check_branch
        %1347 = sbr.rel (%p1345) target = $region72
      $region71: #{tpu_custom_call.1} parent=5 // pred_region
        %s1348 = ssub.s32 %s24, 2
        // Predicated region
        $region73: #{tpu_custom_call.1} parent=71 // pred_check
          %p1349 = pneg %p273
        $region74: #{tpu_custom_call.1} parent=71 // pred_check_branch
          %1351 = sbr.rel (%p1349) target = $region76
        $region75: #{tpu_custom_call.1} parent=71 // pred_region
          %s1352 = sand.u32 %s258, 1
          %s1353 = scalar_lea.sflag [#allocation3], %s1352
          %s1354 = sand.u32 %s258, 1
          %s1355 = smul.addr %s1354, 8
          %s1356 = scalar_lea.vmem [#allocation2], %s1355
          %1357 = dma.done %s1353, 128
        $region76: #{tpu_custom_call.1} parent=71 // pred_fallthru
          _
        // Predicated region
        $region77: #{tpu_custom_call.1} parent=71 // pred_check
          %p1358 = pneg %p299
        $region78: #{tpu_custom_call.1} parent=71 // pred_check_branch
          %1360 = sbr.rel (%p1358) target = $region80
        $region79: #{tpu_custom_call.1} parent=71 // pred_region
          %s1361 = sand.u32 %s284, 1
          %s1362 = scalar_lea.sflag [#allocation5], %s1361
          %s1363 = sand.u32 %s284, 1
          %s1364 = smul.addr %s1363, 16
          %s1365 = scalar_lea.vmem [#allocation4], %s1364
          %1366 = dma.done %s1362, 256
        $region80: #{tpu_custom_call.1} parent=71 // pred_fallthru
          _
      $region72: #{tpu_custom_call.1} parent=5 // pred_fallthru
        _
    $region6: #{tpu_custom_call.1} parent=1 // loop_footer
      %s28 = sadd.s32 1, %s24
    $region7: #{tpu_custom_call.1} parent=1 // loop_footer_branch
      %23 = sbr.rel target = $region3
    $region8: #{tpu_custom_call.1} parent=1 // loop_exit
      _
    %1367 = vsyncpa [#allocation3], 1
    %s1368 = scalar_lea.sflag [#allocation3], 1
    %1369 = vsyncpa %s1368, 1
    %1370 = vsyncpa [#allocation5], 1
    %s1371 = scalar_lea.sflag [#allocation5], 1
    %1372 = vsyncpa %s1371, 1

</llo_original>
